<compile_context>
chip_gen: v7x
topology: tpu7x:2x2x1
jax: 0.10.0
libtpu: 0.0.40
codegen_flags: <defaults>
</compile_context>

<pallas_src>
import functools

import jax
import jax.numpy as jnp
from jax import lax
from jax.experimental import pallas as pl
from jax.experimental.pallas import tpu as pltpu

EPS = 1e-5


def _patch_expand_kernel(x_ref, w_ref, g_ref, b_ref, o_ref):
    # x_ref : (1, R, C)          R = th*W tokens (th consecutive image rows)
    # w_ref : (C, 2C)            expansion weight, resident (constant index_map)
    # g_ref : (1, chunk)         LayerNorm gamma, chunk = C // 2
    # b_ref : (1, chunk)         LayerNorm beta
    # o_ref : (1, th, 2, W, C)   pixel-shuffled output block
    x = x_ref[0]                                              # (R, C)
    # Single full-width MXU matmul; f32 accumulation (bf16-friendly).
    y = jnp.dot(x, w_ref[...], preferred_element_type=jnp.float32)   # (R, 2C)

    gamma = g_ref[...].astype(jnp.float32)                    # (1, chunk)
    beta = b_ref[...].astype(jnp.float32)

    th = o_ref.shape[1]
    w_dim = o_ref.shape[3]
    c_out = o_ref.shape[4]
    chunk = c_out // 2

    # Lane-aligned direct stores are only worthwhile when each chunk slice is a
    # whole number of 128-lane vregs.
    direct_store = (chunk % 128 == 0)

    # Channel layout of y per token: (p1=2, p2=2, c=chunk).  LayerNorm(C//2)
    # acts independently on each chunk.  Two-pass stats in f32 (matches
    # nn.LayerNorm: biased variance, eps inside rsqrt).
    for p1 in range(2):                                       # static unroll
        parts = []
        for p2 in range(2):                                   # static unroll
            q = 2 * p1 + p2
            yq = y[:, q * chunk:(q + 1) * chunk]              # (R, chunk)
            mu = jnp.mean(yq, axis=-1, keepdims=True)
            xc = yq - mu
            var = jnp.mean(xc * xc, axis=-1, keepdims=True)
            v = xc * lax.rsqrt(var + EPS) * gamma + beta      # (R, chunk) f32
            if direct_store:
                o_ref[0, :, p1, :, p2 * chunk:(p2 + 1) * chunk] = (
                    v.reshape(th, w_dim, chunk).astype(o_ref.dtype))
            else:
                parts.append(v)
        if not direct_store:
            val = jnp.concatenate(parts, axis=-1)             # (R, C) f32
            o_ref[0, :, p1, :, :] = (
                val.reshape(th, w_dim, c_out).astype(o_ref.dtype))


def _vmem_budget():
    """(vmem_limit_bytes, block_byte_budget) sized per TPU generation."""
    cap = 64 << 20                      # conservative default (v7x physical)
    try:
        cap = int(pltpu.get_tpu_info().vmem_capacity_bytes)
    except Exception:                   # pragma: no cover - robustness only
        pass
    # Stay well below physical: v5e/v6e (128 MiB) -> 48 MiB scoped,
    # v7x (64 MiB) -> ~38 MiB scoped.
    limit = min(int(cap * 0.6), 48 << 20)
    # Budget for double-buffered blocks + in-kernel f32 temporaries.
    budget = limit // 3
    return limit, budget


def _choose_th(H, W, max_rows, align):
    """Largest divisor of H within the row budget whose token count th*W is
    sublane-aligned; falls back to the full image (R == L is always legal
    w.r.t. the (8,128) BlockSpec rule)."""
    max_rows = max(1, min(int(max_rows), H))
    divisors = [d for d in range(1, H + 1) if H % d == 0]
    for a in (align, 8):
        cands = [d for d in divisors if d <= max_rows and (d * W) % a == 0]
        if cands:
            return max(cands)
    return H


@functools.partial(jax.jit, static_argnames=("input_resolution", "block_rows"))
def patch_expand(x, w_expand, ln_gamma, ln_beta, input_resolution, block_rows=None):
    """x: (B, H*W, C) -> (B, 4*H*W, C//2), same dtype as x."""
    H, W = input_resolution
    B, L, C = x.shape
    assert L == H * W, "input feature has wrong size"
    assert C % 2 == 0, "channel dim must be even"
    chunk = C // 2

    gamma2d = ln_gamma.reshape(1, chunk)
    beta2d = ln_beta.reshape(1, chunk)

    in_b = jnp.dtype(x.dtype).itemsize
    out_b = in_b
    w_b = jnp.dtype(w_expand.dtype).itemsize

    vmem_limit, block_budget = _vmem_budget()
    # Per-image-row live-VMEM estimate: double-buffered x block (2*C*in_b per
    # token) + double-buffered output block (4*C*out_b per token, 2C outputs)
    # + f32 matmul result / normalized temporaries (~24*C per token).
    per_row = W * C * (2 * in_b + 4 * out_b + 24)
    weight_bytes = 2 * (C * 2 * C) * w_b          # double-buffered weight block
    avail = max(block_budget - weight_bytes, per_row)

    if block_rows is not None:
        th = max(1, min(int(block_rows), H))
        while H % th:
            th -= 1
        if (th * W) % 8 and th != H:
            th = H
    else:
        align = 16 if in_b == 2 else 8            # bf16 packs 2 rows / sublane
        th = _choose_th(H, W, avail // per_row, align)
    R = th * W

    # Kernel output is already pixel-shuffled:
    #   out5[b, h, p1, w, p2*chunk + c] == final[b, 2h+p1, 2w+p2, c]
    out5 = pl.pallas_call(
        _patch_expand_kernel,
        out_shape=jax.ShapeDtypeStruct((B, H, 2, W, C), x.dtype),
        grid=(B, H // th),
        in_specs=[
            pl.BlockSpec((1, R, C), lambda b, hb: (b, hb, 0)),      # x tokens
            pl.BlockSpec((C, 2 * C), lambda b, hb: (0, 0)),         # weight, resident
            pl.BlockSpec((1, chunk), lambda b, hb: (0, 0)),         # gamma, resident
            pl.BlockSpec((1, chunk), lambda b, hb: (0, 0)),         # beta, resident
        ],
        out_specs=pl.BlockSpec((1, th, 2, W, C), lambda b, hb: (b, hb, 0, 0, 0)),
        compiler_params=pltpu.CompilerParams(
            dimension_semantics=("parallel", "parallel"),
            vmem_limit_bytes=vmem_limit),
        cost_estimate=pl.CostEstimate(
            flops=4 * B * L * C * C,
            transcendentals=4 * B * L,
            bytes_accessed=(B * L * C * in_b            # read x
                            + 2 * C * C * w_b            # read weight
                            + 4 * B * L * chunk * out_b  # write output
                            + 2 * chunk * 4)),            # gamma/beta
    )(x, w_expand, gamma2d, beta2d)

    # Metadata-only reshape: (B, H, 2, W, C) ≡ (B, 2H, 2W, C//2) ≡ (B, 4L, C//2).
    return out5.reshape(B, 4 * L, chunk)


def patch_expand_reference(x, w_expand, ln_gamma, ln_beta, input_resolution):
    """Pure-JAX reference following the PyTorch op order exactly (f32 math)."""
    H, W = input_resolution
    B, L, C = x.shape
    y = jnp.einsum("blc,cd->bld", x.astype(jnp.float32), w_expand.astype(jnp.float32))
    C2 = y.shape[-1]
    chunk = C2 // 4
    y = y.reshape(B, H, W, 2, 2, chunk)
    y = jnp.transpose(y, (0, 1, 3, 2, 4, 5)).reshape(B, 4 * L, chunk)
    mu = jnp.mean(y, axis=-1, keepdims=True)
    var = jnp.mean((y - mu) ** 2, axis=-1, keepdims=True)
    ynorm = (y - mu) / jnp.sqrt(var + EPS)
    return ynorm * ln_gamma.astype(jnp.float32) + ln_beta.astype(jnp.float32)


if __name__ == "__main__":
    key = jax.random.PRNGKey(0)
    k_x, k_w, k_g, k_b = jax.random.split(key, 4)

    # Small shapes consistent with the module: dim=128, input_resolution=(8, 8)
    B, H, W, dim = 2, 8, 8, 128
    L = H * W

    x = jax.random.normal(k_x, (B, L, dim), dtype=jnp.float32)
    # nn.Linear(dim, 2*dim, bias=False): applied as x @ W with W of shape (dim, 2*dim)
    w_expand = jax.random.normal(k_w, (dim, 2 * dim), dtype=jnp.float32) * 0.05
    # LayerNorm(dim // 2) affine params (deterministic, non-trivial)
    ln_gamma = 1.0 + 0.1 * jax.random.normal(k_g, (dim // 2,), dtype=jnp.float32)
    ln_beta = 0.1 * jax.random.normal(k_b, (dim // 2,), dtype=jnp.float32)

    # --- float32 path (tight check) ---
    out = jax.block_until_ready(
        patch_expand(x, w_expand, ln_gamma, ln_beta, input_resolution=(H, W)))
    ref = jax.block_until_ready(
        patch_expand_reference(x, w_expand, ln_gamma, ln_beta, (H, W)))
    assert out.shape == (B, 4 * L, dim // 2), out.shape
    max_err = float(jnp.max(jnp.abs(out - ref)))
    assert jnp.allclose(out, ref, atol=1e-4, rtol=1e-4), max_err

    # --- bf16 path (inputs stay bf16; f32 accumulate + f32 LN stats inside) ---
    xb = x.astype(jnp.bfloat16)
    wb = w_expand.astype(jnp.bfloat16)
    out_bf16 = jax.block_until_ready(
        patch_expand(xb, wb, ln_gamma, ln_beta, input_resolution=(H, W)))
    ref_bf16 = patch_expand_reference(
        xb.astype(jnp.float32), wb.astype(jnp.float32), ln_gamma, ln_beta, (H, W))
    assert out_bf16.dtype == jnp.bfloat16
    assert out_bf16.shape == (B, 4 * L, dim // 2)
    assert jnp.allclose(out_bf16.astype(jnp.float32), ref_bf16, atol=5e-2, rtol=5e-2)

    print("KERNEL_OK")
</pallas_src>

<mosaic_0001>
module attributes {stable_mosaic.version = 11 : i64} {
  func.func @_patch_expand_kernel(%arg0: i32, %arg1: i32, %arg2: memref<1x64x128xf32, #tpu.memory_space<vmem>>, %arg3: memref<128x256xf32, #tpu.memory_space<vmem>>, %arg4: memref<1x64xf32, #tpu.memory_space<vmem>>, %arg5: memref<1x64xf32, #tpu.memory_space<vmem>>, %arg6: memref<1x8x2x8x128xf32, #tpu.memory_space<vmem>>) attributes {dimension_semantics = [#tpu.dimension_semantics<parallel>, #tpu.dimension_semantics<parallel>], iteration_bounds = array<i64: 2, 1>, scalar_prefetch = 0 : i64, scratch_operands = 0 : i64, tpu.core_type = #tpu.core_type<tc>, window_params = [{transform_indices = @transform_0, window_bounds = array<i64: 1, 64, 128>}, {pipeline_mode = #tpu.pipeline_mode<synchronous>, transform_indices = @transform_1, window_bounds = array<i64: 128, 256>}, {pipeline_mode = #tpu.pipeline_mode<synchronous>, transform_indices = @transform_2, window_bounds = array<i64: 1, 64>}, {pipeline_mode = #tpu.pipeline_mode<synchronous>, transform_indices = @transform_3, window_bounds = array<i64: 1, 64>}, {transform_indices = @transform_4, window_bounds = array<i64: 1, 8, 2, 8, 128>}]} {
    %c0 = arith.constant 0 : index
    %c0_0 = arith.constant 0 : index
    %c0_1 = arith.constant 0 : index
    %0 = vector.load %arg2[%c0, %c0_0, %c0_1] : memref<1x64x128xf32, #tpu.memory_space<vmem>>, vector<1x64x128xf32>
    %1 = vector.shape_cast %0 : vector<1x64x128xf32> to vector<64x128xf32>
    %c0_2 = arith.constant 0 : index
    %c0_3 = arith.constant 0 : index
    %2 = vector.load %arg3[%c0_2, %c0_3] : memref<128x256xf32, #tpu.memory_space<vmem>>, vector<128x256xf32>
    %cst = arith.constant dense<0.000000e+00> : vector<64x256xf32>
    %3 = tpu.matmul %1, %2, %cst {dimension_numbers = #tpu.dot_dimension_numbers<[1], [0], [0], [1], [0, 0, 1, 1], [], []>} : vector<64x128xf32>, vector<128x256xf32>, vector<64x256xf32> -> vector<64x256xf32>
    %c0_4 = arith.constant 0 : index
    %c0_5 = arith.constant 0 : index
    %4 = vector.load %arg4[%c0_4, %c0_5] : memref<1x64xf32, #tpu.memory_space<vmem>>, vector<1x64xf32>
    %c0_6 = arith.constant 0 : index
    %c0_7 = arith.constant 0 : index
    %5 = vector.load %arg5[%c0_6, %c0_7] : memref<1x64xf32, #tpu.memory_space<vmem>>, vector<1x64xf32>
    %6 = vector.extract_strided_slice %3 {offsets = [0, 0], sizes = [64, 64], strides = [1, 1]} : vector<64x256xf32> to vector<64x64xf32>
    %cst_8 = arith.constant dense<0.000000e+00> : vector<64xf32>
    %7 = vector.multi_reduction <add>, %6, %cst_8 [1] : vector<64x64xf32> to vector<64xf32>
    %8 = vector.shape_cast %7 : vector<64xf32> to vector<64x1xf32>
    %cst_9 = arith.constant 6.400000e+01 : f32
    %9 = vector.broadcast %cst_9 : f32 to vector<64x1xf32>
    %10 = arith.divf %8, %9 : vector<64x1xf32>
    %11 = vector.broadcast %10 : vector<64x1xf32> to vector<64x64xf32>
    %12 = arith.subf %6, %11 : vector<64x64xf32>
    %13 = arith.mulf %12, %12 : vector<64x64xf32>
    %cst_10 = arith.constant dense<0.000000e+00> : vector<64xf32>
    %14 = vector.multi_reduction <add>, %13, %cst_10 [1] : vector<64x64xf32> to vector<64xf32>
    %15 = vector.shape_cast %14 : vector<64xf32> to vector<64x1xf32>
    %cst_11 = arith.constant 6.400000e+01 : f32
    %16 = vector.broadcast %cst_11 : f32 to vector<64x1xf32>
    %17 = arith.divf %15, %16 : vector<64x1xf32>
    %cst_12 = arith.constant 9.99999974E-6 : f32
    %18 = vector.broadcast %cst_12 : f32 to vector<64x1xf32>
    %19 = arith.addf %17, %18 : vector<64x1xf32>
    %20 = math.rsqrt %19 : vector<64x1xf32>
    %21 = vector.broadcast %20 : vector<64x1xf32> to vector<64x64xf32>
    %22 = arith.mulf %12, %21 : vector<64x64xf32>
    %23 = vector.broadcast %4 : vector<1x64xf32> to vector<64x64xf32>
    %24 = arith.mulf %22, %23 : vector<64x64xf32>
    %25 = vector.broadcast %5 : vector<1x64xf32> to vector<64x64xf32>
    %26 = arith.addf %24, %25 : vector<64x64xf32>
    %27 = vector.extract_strided_slice %3 {offsets = [0, 64], sizes = [64, 64], strides = [1, 1]} : vector<64x256xf32> to vector<64x64xf32>
    %cst_13 = arith.constant dense<0.000000e+00> : vector<64xf32>
    %28 = vector.multi_reduction <add>, %27, %cst_13 [1] : vector<64x64xf32> to vector<64xf32>
    %29 = vector.shape_cast %28 : vector<64xf32> to vector<64x1xf32>
    %cst_14 = arith.constant 6.400000e+01 : f32
    %30 = vector.broadcast %cst_14 : f32 to vector<64x1xf32>
    %31 = arith.divf %29, %30 : vector<64x1xf32>
    %32 = vector.broadcast %31 : vector<64x1xf32> to vector<64x64xf32>
    %33 = arith.subf %27, %32 : vector<64x64xf32>
    %34 = arith.mulf %33, %33 : vector<64x64xf32>
    %cst_15 = arith.constant dense<0.000000e+00> : vector<64xf32>
    %35 = vector.multi_reduction <add>, %34, %cst_15 [1] : vector<64x64xf32> to vector<64xf32>
    %36 = vector.shape_cast %35 : vector<64xf32> to vector<64x1xf32>
    %cst_16 = arith.constant 6.400000e+01 : f32
    %37 = vector.broadcast %cst_16 : f32 to vector<64x1xf32>
    %38 = arith.divf %36, %37 : vector<64x1xf32>
    %cst_17 = arith.constant 9.99999974E-6 : f32
    %39 = vector.broadcast %cst_17 : f32 to vector<64x1xf32>
    %40 = arith.addf %38, %39 : vector<64x1xf32>
    %41 = math.rsqrt %40 : vector<64x1xf32>
    %42 = vector.broadcast %41 : vector<64x1xf32> to vector<64x64xf32>
    %43 = arith.mulf %33, %42 : vector<64x64xf32>
    %44 = vector.broadcast %4 : vector<1x64xf32> to vector<64x64xf32>
    %45 = arith.mulf %43, %44 : vector<64x64xf32>
    %46 = vector.broadcast %5 : vector<1x64xf32> to vector<64x64xf32>
    %47 = arith.addf %45, %46 : vector<64x64xf32>
    %48 = tpu.concatenate %26, %47 in 1 : vector<64x64xf32>, vector<64x64xf32> -> vector<64x128xf32>
    %49 = vector.shape_cast %48 : vector<64x128xf32> to vector<8x8x128xf32>
    %c0_18 = arith.constant 0 : index
    %c0_19 = arith.constant 0 : index
    %c0_20 = arith.constant 0 : index
    %c0_21 = arith.constant 0 : index
    %c0_22 = arith.constant 0 : index
    %50 = vector.load %arg6[%c0_18, %c0_19, %c0_20, %c0_21, %c0_22] : memref<1x8x2x8x128xf32, #tpu.memory_space<vmem>>, vector<1x8x1x8x128xf32>
    %51 = vector.shape_cast %50 : vector<1x8x1x8x128xf32> to vector<8x8x128xf32>
    %52 = vector.shape_cast %49 : vector<8x8x128xf32> to vector<1x8x1x8x128xf32>
    tpu.vector_store %arg6[%c0_18, %c0_19, %c0_20, %c0_21, %c0_22], %52 {strides = array<i32>} : memref<1x8x2x8x128xf32, #tpu.memory_space<vmem>>, vector<1x8x1x8x128xf32>,
    %53 = vector.extract_strided_slice %3 {offsets = [0, 128], sizes = [64, 64], strides = [1, 1]} : vector<64x256xf32> to vector<64x64xf32>
    %cst_23 = arith.constant dense<0.000000e+00> : vector<64xf32>
    %54 = vector.multi_reduction <add>, %53, %cst_23 [1] : vector<64x64xf32> to vector<64xf32>
    %55 = vector.shape_cast %54 : vector<64xf32> to vector<64x1xf32>
    %cst_24 = arith.constant 6.400000e+01 : f32
    %56 = vector.broadcast %cst_24 : f32 to vector<64x1xf32>
    %57 = arith.divf %55, %56 : vector<64x1xf32>
    %58 = vector.broadcast %57 : vector<64x1xf32> to vector<64x64xf32>
    %59 = arith.subf %53, %58 : vector<64x64xf32>
    %60 = arith.mulf %59, %59 : vector<64x64xf32>
    %cst_25 = arith.constant dense<0.000000e+00> : vector<64xf32>
    %61 = vector.multi_reduction <add>, %60, %cst_25 [1] : vector<64x64xf32> to vector<64xf32>
    %62 = vector.shape_cast %61 : vector<64xf32> to vector<64x1xf32>
    %cst_26 = arith.constant 6.400000e+01 : f32
    %63 = vector.broadcast %cst_26 : f32 to vector<64x1xf32>
    %64 = arith.divf %62, %63 : vector<64x1xf32>
    %cst_27 = arith.constant 9.99999974E-6 : f32
    %65 = vector.broadcast %cst_27 : f32 to vector<64x1xf32>
    %66 = arith.addf %64, %65 : vector<64x1xf32>
    %67 = math.rsqrt %66 : vector<64x1xf32>
    %68 = vector.broadcast %67 : vector<64x1xf32> to vector<64x64xf32>
    %69 = arith.mulf %59, %68 : vector<64x64xf32>
    %70 = vector.broadcast %4 : vector<1x64xf32> to vector<64x64xf32>
    %71 = arith.mulf %69, %70 : vector<64x64xf32>
    %72 = vector.broadcast %5 : vector<1x64xf32> to vector<64x64xf32>
    %73 = arith.addf %71, %72 : vector<64x64xf32>
    %74 = vector.extract_strided_slice %3 {offsets = [0, 192], sizes = [64, 64], strides = [1, 1]} : vector<64x256xf32> to vector<64x64xf32>
    %cst_28 = arith.constant dense<0.000000e+00> : vector<64xf32>
    %75 = vector.multi_reduction <add>, %74, %cst_28 [1] : vector<64x64xf32> to vector<64xf32>
    %76 = vector.shape_cast %75 : vector<64xf32> to vector<64x1xf32>
    %cst_29 = arith.constant 6.400000e+01 : f32
    %77 = vector.broadcast %cst_29 : f32 to vector<64x1xf32>
    %78 = arith.divf %76, %77 : vector<64x1xf32>
    %79 = vector.broadcast %78 : vector<64x1xf32> to vector<64x64xf32>
    %80 = arith.subf %74, %79 : vector<64x64xf32>
    %81 = arith.mulf %80, %80 : vector<64x64xf32>
    %cst_30 = arith.constant dense<0.000000e+00> : vector<64xf32>
    %82 = vector.multi_reduction <add>, %81, %cst_30 [1] : vector<64x64xf32> to vector<64xf32>
    %83 = vector.shape_cast %82 : vector<64xf32> to vector<64x1xf32>
    %cst_31 = arith.constant 6.400000e+01 : f32
    %84 = vector.broadcast %cst_31 : f32 to vector<64x1xf32>
    %85 = arith.divf %83, %84 : vector<64x1xf32>
    %cst_32 = arith.constant 9.99999974E-6 : f32
    %86 = vector.broadcast %cst_32 : f32 to vector<64x1xf32>
    %87 = arith.addf %85, %86 : vector<64x1xf32>
    %88 = math.rsqrt %87 : vector<64x1xf32>
    %89 = vector.broadcast %88 : vector<64x1xf32> to vector<64x64xf32>
    %90 = arith.mulf %80, %89 : vector<64x64xf32>
    %91 = vector.broadcast %4 : vector<1x64xf32> to vector<64x64xf32>
    %92 = arith.mulf %90, %91 : vector<64x64xf32>
    %93 = vector.broadcast %5 : vector<1x64xf32> to vector<64x64xf32>
    %94 = arith.addf %92, %93 : vector<64x64xf32>
    %95 = tpu.concatenate %73, %94 in 1 : vector<64x64xf32>, vector<64x64xf32> -> vector<64x128xf32>
    %96 = vector.shape_cast %95 : vector<64x128xf32> to vector<8x8x128xf32>
    %c0_33 = arith.constant 0 : index
    %c0_34 = arith.constant 0 : index
    %c1 = arith.constant 1 : index
    %c0_35 = arith.constant 0 : index
    %c0_36 = arith.constant 0 : index
    %97 = vector.load %arg6[%c0_33, %c0_34, %c1, %c0_35, %c0_36] : memref<1x8x2x8x128xf32, #tpu.memory_space<vmem>>, vector<1x8x1x8x128xf32>
    %98 = vector.shape_cast %97 : vector<1x8x1x8x128xf32> to vector<8x8x128xf32>
    %99 = vector.shape_cast %96 : vector<8x8x128xf32> to vector<1x8x1x8x128xf32>
    tpu.vector_store %arg6[%c0_33, %c0_34, %c1, %c0_35, %c0_36], %99 {strides = array<i32>} : memref<1x8x2x8x128xf32, #tpu.memory_space<vmem>>, vector<1x8x1x8x128xf32>,
    return
  }
  func.func @transform_0(%arg0: i32, %arg1: i32) -> (i32, i32, i32) {
    %c0_i32 = arith.constant 0 : i32
    %c0_i32_0 = arith.constant 0 : i32
    return %arg0, %arg1, %c0_i32 : i32, i32, i32
  }
  func.func @transform_1(%arg0: i32, %arg1: i32) -> (i32, i32) {
    %c0_i32 = arith.constant 0 : i32
    %c0_i32_0 = arith.constant 0 : i32
    %c0_i32_1 = arith.constant 0 : i32
    return %c0_i32, %c0_i32_0 : i32, i32
  }
  func.func @transform_2(%arg0: i32, %arg1: i32) -> (i32, i32) {
    %c0_i32 = arith.constant 0 : i32
    %c0_i32_0 = arith.constant 0 : i32
    %c0_i32_1 = arith.constant 0 : i32
    return %c0_i32, %c0_i32_0 : i32, i32
  }
  func.func @transform_3(%arg0: i32, %arg1: i32) -> (i32, i32) {
    %c0_i32 = arith.constant 0 : i32
    %c0_i32_0 = arith.constant 0 : i32
    %c0_i32_1 = arith.constant 0 : i32
    return %c0_i32, %c0_i32_0 : i32, i32
  }
  func.func @transform_4(%arg0: i32, %arg1: i32) -> (i32, i32, i32, i32, i32) {
    %c0_i32 = arith.constant 0 : i32
    %c0_i32_0 = arith.constant 0 : i32
    %c0_i32_1 = arith.constant 0 : i32
    %c0_i32_2 = arith.constant 0 : i32
    return %arg0, %arg1, %c0_i32, %c0_i32_0, %c0_i32_1 : i32, i32, i32, i32, i32
  }
}

</mosaic_0001>

<llo_original>
// kernel: patch_expand.1
$region0: #{patch_expand.1}
  #allocation0 [shape = 'u32[]', space=smem, size = 0x4, offset = 0x4, fixed_abs, tag = 'smem constant byte address 0x4 - core index']
  #allocation1 [shape = 'u32[144,128]{1,0:T(1,128)}', space=vmem, size = 0x12000, scoped, tag = 'internal scratch']
  %s0 = inlined_call_operand.hbm [shape: f32[2,64,128], index: 0, kind: input, shape index: {}]
  %s1 = inlined_call_operand.hbm [shape: f32[128,256], index: 1, kind: input, shape index: {}]
  %s2 = inlined_call_operand.vmem [shape: f32[1,64], index: 2, kind: input, shape index: {}]
  %s3 = inlined_call_operand.vmem [shape: f32[1,64], index: 3, kind: input, shape index: {}]
  %s4 = inlined_call_operand.vmem [shape: f32[2,8,2,8,128], index: 4, kind: output, shape index: {}]
  %s5 = sld [smem:[#allocation0]]
  $region57: #{patch_expand.1} parent=0
    _
  %s7 = ssub.s32 1, %s5
  %s8 = scalar_select 0, %s7, %s5
  $region1: #{patch_expand.1} parent=0
    #allocation2 [shape = 'u8[65536]{0}', space=vmem, size = 0x10000, scoped, tag = 'input window, operand 0']
    #allocation3 [shape = 's32[2]{0}', space=sflag, size = 0x8, scoped, tag = 'scoped memory for patch_expand.1']
    #allocation4 [shape = 'u8[131072]{0}', space=vmem, size = 0x20000, scoped, tag = 'input window, operand 1, single buffered']
    #allocation5 [shape = 's32[1]{0}', space=sflag, size = 0x4, scoped, tag = 'scoped memory for patch_expand.1']
    %9 = vsyncpa [#allocation3], 0
    %s10 = scalar_lea.sflag [#allocation3], 1
    %11 = vsyncpa %s10, 0
    %12 = vsyncpa [#allocation5], 0
    loop: start=0, step=1, limit=4
    $region2: #{patch_expand.1} parent=1 // loop_pre_header
      _
    $region3: #{patch_expand.1} parent=1 // loop_header
      %s14 = sphi 0, %s18
      %p15 = scmp.ge.s32.totalorder %s14, 4
      %s21 = sphi 0, %s33
      %s22 = sphi 0, %s29
      %s23 = sphi 0, %s21
      %s24 = sphi 0, %s22
      %s25 = sphi 0, %s23
      %s26 = sphi 0, %s24
      %s38 = sphi 0, %s40
      %s41 = sphi 0, %s38
      %s42 = sphi 0, %s41
      %s58 = sphi 0, %s42
      %s62 = sphi 0, %s62
      %s64 = sphi 0, %s62
      %s65 = sphi 0, %s64
      %s79 = sphi 0, %s65
      %s83 = sphi 0, %s83
      %s85 = sphi 0, %s83
      %s86 = sphi 0, %s85
      %s100 = sphi 0, %s86
      %s104 = sphi 0, %s104
      %s106 = sphi 0, %s104
      %s107 = sphi 0, %s106
      %s121 = sphi 0, %s107
      %s129 = sphi 0, %s131
      %s132 = sphi 0, %s129
      %s133 = sphi 0, %s132
      %s149 = sphi 0, %s133
    $region4: #{patch_expand.1} parent=1 // loop_header_branch
      %17 = sbr.rel (%p15) target = $region8
    $region5: #{patch_expand.1} parent=1 // loop_body
      %s19 = ssub.s32 %s14, 1
      %s20 = ssub.s32 %s14, 2
      %s27 = sadd.s32 1, %s22
      %p28 = scmp.ge.s32.totalorder %s27, 1
      %s29 = scalar_select %p28, 0, %s27
      %s30 = sadd.s32 1, %s21
      %s31 = scalar_select %p28, %s30, %s21
      %p32 = scmp.ge.s32.totalorder %s31, 2
      %s33 = scalar_select %p32, 0, %s31
      %s34 = ssub.s32 %s21, %s33
      %s35 = ssub.s32 %s22, %s29
      %s36 = sor.u32 %s34, %s35
      %p37 = scmp.eq.s32.totalorder %s36, 0
      %s39 = sadd.s32 %s38, 1
      %s40 = scalar_select %p37, %s38, %s39
      %p43 = pneg %p37
      %p44 = scmp.eq.s32.totalorder %s14, 1
      %p45 = por %p43, %p44
      %p46 = scmp.ne.s32.totalorder %s38, %s41
      %p47 = scmp.eq.s32.totalorder %s14, 0
      %p48 = por %p46, %p47
      %p49 = scmp.ne.s32.totalorder %s38, %s41
      %p50 = scmp.eq.s32.totalorder %s19, 1
      %p51 = por %p49, %p50
      %p52 = scmp.ne.s32.totalorder %s41, %s42
      %p53 = scmp.eq.s32.totalorder %s19, 0
      %p54 = por %p52, %p53
      %p55 = scmp.ne.s32.totalorder %s41, %s42
      %p56 = scmp.eq.s32.totalorder %s20, 1
      %p57 = por %p55, %p56
      %p59 = scmp.ne.s32.totalorder %s42, %s58
      %p60 = scmp.eq.s32.totalorder %s20, 0
      %p61 = por %p59, %p60
      %s63 = sadd.s32 %s62, 1
      %p66 = scmp.eq.s32.totalorder %s14, 1
      %p67 = scmp.ne.s32.totalorder %s62, %s64
      %p68 = scmp.eq.s32.totalorder %s14, 0
      %p69 = por %p67, %p68
      %p70 = scmp.ne.s32.totalorder %s62, %s64
      %p71 = scmp.eq.s32.totalorder %s19, 1
      %p72 = por %p70, %p71
      %p73 = scmp.ne.s32.totalorder %s64, %s65
      %p74 = scmp.eq.s32.totalorder %s19, 0
      %p75 = por %p73, %p74
      %p76 = scmp.ne.s32.totalorder %s64, %s65
      %p77 = scmp.eq.s32.totalorder %s20, 1
      %p78 = por %p76, %p77
      %p80 = scmp.ne.s32.totalorder %s65, %s79
      %p81 = scmp.eq.s32.totalorder %s20, 0
      %p82 = por %p80, %p81
      %s84 = sadd.s32 %s83, 1
      %p87 = scmp.eq.s32.totalorder %s14, 1
      %p88 = scmp.ne.s32.totalorder %s83, %s85
      %p89 = scmp.eq.s32.totalorder %s14, 0
      %p90 = por %p88, %p89
      %p91 = scmp.ne.s32.totalorder %s83, %s85
      %p92 = scmp.eq.s32.totalorder %s19, 1
      %p93 = por %p91, %p92
      %p94 = scmp.ne.s32.totalorder %s85, %s86
      %p95 = scmp.eq.s32.totalorder %s19, 0
      %p96 = por %p94, %p95
      %p97 = scmp.ne.s32.totalorder %s85, %s86
      %p98 = scmp.eq.s32.totalorder %s20, 1
      %p99 = por %p97, %p98
      %p101 = scmp.ne.s32.totalorder %s86, %s100
      %p102 = scmp.eq.s32.totalorder %s20, 0
      %p103 = por %p101, %p102
      %s105 = sadd.s32 %s104, 1
      %p108 = scmp.eq.s32.totalorder %s14, 1
      %p109 = scmp.ne.s32.totalorder %s104, %s106
      %p110 = scmp.eq.s32.totalorder %s14, 0
      %p111 = por %p109, %p110
      %p112 = scmp.ne.s32.totalorder %s104, %s106
      %p113 = scmp.eq.s32.totalorder %s19, 1
      %p114 = por %p112, %p113
      %p115 = scmp.ne.s32.totalorder %s106, %s107
      %p116 = scmp.eq.s32.totalorder %s19, 0
      %p117 = por %p115, %p116
      %p118 = scmp.ne.s32.totalorder %s106, %s107
      %p119 = scmp.eq.s32.totalorder %s20, 1
      %p120 = por %p118, %p119
      %p122 = scmp.ne.s32.totalorder %s107, %s121
      %p123 = scmp.eq.s32.totalorder %s20, 0
      %p124 = por %p122, %p123
      %s125 = ssub.s32 %s21, %s33
      %s126 = ssub.s32 %s22, %s29
      %s127 = sor.u32 %s125, %s126
      %p128 = scmp.eq.s32.totalorder %s127, 0
      %s130 = sadd.s32 %s129, 1
      %s131 = scalar_select %p128, %s129, %s130
      %p134 = pneg %p128
      %p135 = scmp.eq.s32.totalorder %s14, 1
      %p136 = por %p134, %p135
      %p137 = scmp.ne.s32.totalorder %s129, %s132
      %p138 = scmp.eq.s32.totalorder %s14, 0
      %p139 = por %p137, %p138
      %p140 = scmp.ne.s32.totalorder %s129, %s132
      %p141 = scmp.eq.s32.totalorder %s19, 1
      %p142 = por %p140, %p141
      %p143 = scmp.ne.s32.totalorder %s132, %s133
      %p144 = scmp.eq.s32.totalorder %s19, 0
      %p145 = por %p143, %p144
      %p146 = scmp.ne.s32.totalorder %s132, %s133
      %p147 = scmp.eq.s32.totalorder %s20, 1
      %p148 = por %p146, %p147
      %p150 = scmp.ne.s32.totalorder %s133, %s149
      %p151 = scmp.eq.s32.totalorder %s20, 0
      %p152 = por %p150, %p151
      %p153 = scmp.le.s32.totalorder 1, %s14
      %p154 = scmp.lt.s32.totalorder %s14, 3
      %p155 = pnand %p153, %p154
      %p156 = pneg %p155
      // Predicated region
      $region9: #{patch_expand.1} parent=5 // pred_check
        _
      $region10: #{patch_expand.1} parent=5 // pred_check_branch
        %158 = sbr.rel (%p155) target = $region12
      $region11: #{patch_expand.1} parent=5 // pred_region
        %s159 = ssub.s32 %s14, 1
        // Predicated region
        $region13: #{patch_expand.1} parent=11 // pred_check
          %p160 = pneg %p75
        $region14: #{patch_expand.1} parent=11 // pred_check_branch
          %162 = sbr.rel (%p160) target = $region16
        $region15: #{patch_expand.1} parent=11 // pred_region
          %s164 = ssub.s32 4096, 4096
          %165 = vsyncadd [#allocation5], %s164
          %s166 = sshll.u32 [#allocation4], 4
          %s167 = int_to_ptr.vmem [resolvable:$true] %s166
          %172 = dma.hbm_to_vmem [thread:$0]  %s1, 4096, %s167, [#allocation5], 256, 256, 16
        $region16: #{patch_expand.1} parent=11 // pred_fallthru
          _
        // Predicated region
        $region17: #{patch_expand.1} parent=11 // pred_check
          %p173 = pneg %p96
        $region18: #{patch_expand.1} parent=11 // pred_check_branch
          %175 = sbr.rel (%p173) target = $region20
        $region19: #{patch_expand.1} parent=11 // pred_region
          _
        $region20: #{patch_expand.1} parent=11 // pred_fallthru
          _
        // Predicated region
        $region21: #{patch_expand.1} parent=11 // pred_check
          %p176 = pneg %p117
        $region22: #{patch_expand.1} parent=11 // pred_check_branch
          %178 = sbr.rel (%p176) target = $region24
        $region23: #{patch_expand.1} parent=11 // pred_region
          _
        $region24: #{patch_expand.1} parent=11 // pred_fallthru
          _
      $region12: #{patch_expand.1} parent=5 // pred_fallthru
        _
      %p179 = scmp.lt.s32.totalorder %s14, 2
      // Predicated region
      $region25: #{patch_expand.1} parent=5 // pred_check
        %p180 = pneg %p179
      $region26: #{patch_expand.1} parent=5 // pred_check_branch
        %182 = sbr.rel (%p180) target = $region28
      $region27: #{patch_expand.1} parent=5 // pred_region
        // Predicated region
        $region29: #{patch_expand.1} parent=27 // pred_check
          %p183 = pneg %p48
        $region30: #{patch_expand.1} parent=27 // pred_check_branch
          %185 = sbr.rel (%p183) target = $region32
        $region31: #{patch_expand.1} parent=27 // pred_region
          %s186 = sand.u32 %s38, 1
          %s187 = scalar_lea.sflag [#allocation3], %s186
          %s188 = sand.u32 %s38, 1
          %s189 = smul.addr %s188, 64
          %s190 = scalar_lea.vmem [#allocation2], %s189
          %s191 = smul.u32 8, %s22
          %s193 = ssub.s32 1024, 1024
          %194 = vsyncadd %s187, %s193
          %s195 = smul.addr %s21, 8
          %s196 = sadd.s32 %s191, %s195
          %s197 = smul.addr %s196, 128
          %s198 = scalar_lea.hbm %s0, %s197
          %s199 = sshll.u32 %s190, 4
          %s200 = int_to_ptr.vmem [resolvable:$true] %s199
          %205 = dma.hbm_to_vmem [thread:$0]  %s198, 1024, %s200, %s187, 128, 128, 8
        $region32: #{patch_expand.1} parent=27 // pred_fallthru
          _
      $region28: #{patch_expand.1} parent=5 // pred_fallthru
        _
      %p206 = scmp.le.s32.totalorder 1, %s14
      %p207 = scmp.lt.s32.totalorder %s14, 3
      %p208 = pnand %p206, %p207
      %p209 = pneg %p208
      // Predicated region
      $region33: #{patch_expand.1} parent=5 // pred_check
        _
      $region34: #{patch_expand.1} parent=5 // pred_check_branch
        %211 = sbr.rel (%p208) target = $region36
      $region35: #{patch_expand.1} parent=5 // pred_region
        %s212 = ssub.s32 %s14, 1
        %s213 = sand.u32 %s41, 1
        %s214 = scalar_lea.sflag [#allocation3], %s213
        %s215 = sand.u32 %s41, 1
        %s216 = smul.addr %s215, 64
        %s217 = scalar_lea.vmem [#allocation2], %s216
        // Predicated region
        $region37: #{patch_expand.1} parent=35 // pred_check
          %p218 = pneg %p54
        $region38: #{patch_expand.1} parent=35 // pred_check_branch
          %220 = sbr.rel (%p218) target = $region40
        $region39: #{patch_expand.1} parent=35 // pred_region
          %221 = dma.done %s214, 1024
        $region40: #{patch_expand.1} parent=35 // pred_fallthru
          _
        // Predicated region
        $region41: #{patch_expand.1} parent=35 // pred_check
          %p222 = pneg %p75
        $region42: #{patch_expand.1} parent=35 // pred_check_branch
          %224 = sbr.rel (%p222) target = $region44
        $region43: #{patch_expand.1} parent=35 // pred_region
          %225 = dma.done [#allocation5], 4096
        $region44: #{patch_expand.1} parent=35 // pred_fallthru
          _
        %s226 = sand.u32 %s41, 1
        %s227 = scalar_lea.sflag [#allocation3], %s226
        %s228 = sand.u32 %s41, 1
        %s229 = smul.addr %s228, 64
        %s230 = scalar_lea.vmem [#allocation2], %s229
        %p231 = pneg %p54
        %p232 = pneg %p51
        %p233 = pneg %p75
        %p234 = pneg %p72
        %p235 = pneg %p96
        %p236 = pneg %p93
        %p237 = pneg %p117
        %p238 = pneg %p114
        %p239 = pneg %p145
        %p240 = pneg %p142
        %s241 = smul.u32 8, %s24
        %p242 = scmp.lt.s32.totalorder %s23, 1
        %s243 = scalar_select %p242, %s23, 1
        %p244 = scmp.lt.s32.totalorder %s241, 7
        %s245 = scalar_select %p244, %s241, 7
        %s246 = smul.addr %s245, 2
        %s247 = smul.addr %s243, 16
        %s248 = sadd.s32 %s246, %s247
        %s249 = smul.addr %s248, 8
        %s250 = scalar_lea.vmem %s4, %s249
        %s251 = smul.u32 8, %s24
        %s252 = smul.u32 8, %s24
        %p253 = scmp.lt.s32.totalorder %s23, 1
        %s254 = scalar_select %p253, %s23, 1
        %p255 = scmp.lt.s32.totalorder %s252, 7
        %s256 = scalar_select %p255, %s252, 7
        %s257 = smul.addr %s256, 2
        %s258 = smul.addr %s254, 16
        %s259 = sadd.s32 %s257, %s258
        %s260 = smul.addr %s259, 8
        %s261 = scalar_lea.vmem %s4, %s260
        %s262 = smul.u32 8, %s24
        %v263 = vld [vmem:[%s217] sm:$0xff]
        %v264 = vld [vmem:[%s217 + $0x8] sm:$0xff]
        %v265 = vld [vmem:[%s217 + $0x10] sm:$0xff]
        %v266 = vld [vmem:[%s217 + $0x18] sm:$0xff]
        %v267 = vld [vmem:[%s217 + $0x20] sm:$0xff]
        %v268 = vld [vmem:[%s217 + $0x28] sm:$0xff]
        %v269 = vld [vmem:[%s217 + $0x30] sm:$0xff]
        %v270 = vld [vmem:[%s217 + $0x38] sm:$0xff]
        %v271 = vld [vmem:[#allocation4] sm:$0xff]
        %v272 = vld [vmem:[#allocation4 + $0x8] sm:$0xff]
        %v273 = vld [vmem:[#allocation4 + $0x10] sm:$0xff]
        %v274 = vld [vmem:[#allocation4 + $0x18] sm:$0xff]
        %v275 = vld [vmem:[#allocation4 + $0x20] sm:$0xff]
        %v276 = vld [vmem:[#allocation4 + $0x28] sm:$0xff]
        %v277 = vld [vmem:[#allocation4 + $0x30] sm:$0xff]
        %v278 = vld [vmem:[#allocation4 + $0x38] sm:$0xff]
        %v279 = vld [vmem:[#allocation4 + $0x40] sm:$0xff]
        %v280 = vld [vmem:[#allocation4 + $0x48] sm:$0xff]
        %v281 = vld [vmem:[#allocation4 + $0x50] sm:$0xff]
        %v282 = vld [vmem:[#allocation4 + $0x58] sm:$0xff]
        %v283 = vld [vmem:[#allocation4 + $0x60] sm:$0xff]
        %v284 = vld [vmem:[#allocation4 + $0x68] sm:$0xff]
        %v285 = vld [vmem:[#allocation4 + $0x70] sm:$0xff]
        %v286 = vld [vmem:[#allocation4 + $0x78] sm:$0xff]
        %v287 = vld [vmem:[#allocation4 + $0x80] sm:$0xff]
        %v288 = vld [vmem:[#allocation4 + $0x88] sm:$0xff]
        %v289 = vld [vmem:[#allocation4 + $0x90] sm:$0xff]
        %v290 = vld [vmem:[#allocation4 + $0x98] sm:$0xff]
        %v291 = vld [vmem:[#allocation4 + $0xa0] sm:$0xff]
        %v292 = vld [vmem:[#allocation4 + $0xa8] sm:$0xff]
        %v293 = vld [vmem:[#allocation4 + $0xb0] sm:$0xff]
        %v294 = vld [vmem:[#allocation4 + $0xb8] sm:$0xff]
        %v295 = vld [vmem:[#allocation4 + $0xc0] sm:$0xff]
        %v296 = vld [vmem:[#allocation4 + $0xc8] sm:$0xff]
        %v297 = vld [vmem:[#allocation4 + $0xd0] sm:$0xff]
        %v298 = vld [vmem:[#allocation4 + $0xd8] sm:$0xff]
        %v299 = vld [vmem:[#allocation4 + $0xe0] sm:$0xff]
        %v300 = vld [vmem:[#allocation4 + $0xe8] sm:$0xff]
        %v301 = vld [vmem:[#allocation4 + $0xf0] sm:$0xff]
        %v302 = vld [vmem:[#allocation4 + $0xf8] sm:$0xff]
        %303 = vmatprep.subr.mxu0 %v272
        %304 = vmatpush1.msra.mxu0 %v271
        %305 = vmatprep.subr.mxu0 %v274
        %306 = vmatpush1.msra.mxu0 %v273
        %307 = vmatprep.subr.mxu0 %v276
        %308 = vmatpush1.msra.mxu0 %v275
        %309 = vmatprep.subr.mxu0 %v278
        %310 = vmatpush1.msra.mxu0 %v277
        %311 = vmatprep.subr.mxu0 %v280
        %312 = vmatpush1.msra.mxu0 %v279
        %313 = vmatprep.subr.mxu0 %v282
        %314 = vmatpush1.msra.mxu0 %v281
        %315 = vmatprep.subr.mxu0 %v284
        %316 = vmatpush1.msra.mxu0 %v283
        %317 = vmatprep.subr.mxu0 %v286
        %318 = vmatpush1.msra.mxu0 %v285
        %319 = vmatprep.subr.mxu0 %v288
        %320 = vmatpush1.msra.mxu0 %v287
        %321 = vmatprep.subr.mxu0 %v290
        %322 = vmatpush1.msra.mxu0 %v289
        %323 = vmatprep.subr.mxu0 %v292
        %324 = vmatpush1.msra.mxu0 %v291
        %325 = vmatprep.subr.mxu0 %v294
        %326 = vmatpush1.msra.mxu0 %v293
        %327 = vmatprep.subr.mxu0 %v296
        %328 = vmatpush1.msra.mxu0 %v295
        %329 = vmatprep.subr.mxu0 %v298
        %330 = vmatpush1.msra.mxu0 %v297
        %331 = vmatprep.subr.mxu0 %v300
        %332 = vmatpush1.msra.mxu0 %v299
        %333 = vmatprep.subr.mxu0 %v302
        %334 = vmatpush1.msra.mxu0 %v301
        %335 = vmatprep.subr.mxu0 0.0
        %336 = vmatpush1.msra.mxu0 0.0
        %337 = vmatprep.subr.mxu0 0.0
        %338 = vmatpush1.msra.mxu0 0.0
        %339 = vmatprep.subr.mxu0 0.0
        %340 = vmatpush1.msra.mxu0 0.0
        %341 = vmatprep.subr.mxu0 0.0
        %342 = vmatpush1.msra.mxu0 0.0
        %343 = vmatprep.subr.mxu0 0.0
        %344 = vmatpush1.msra.mxu0 0.0
        %345 = vmatprep.subr.mxu0 0.0
        %346 = vmatpush1.msra.mxu0 0.0
        %347 = vmatprep.subr.mxu0 0.0
        %348 = vmatpush1.msra.mxu0 0.0
        %349 = vmatprep.subr.mxu0 0.0
        %350 = vmatpush1.msra.mxu0 0.0
        %351 = vmatprep.subr.mxu0 0.0
        %352 = vmatpush1.msra.mxu0 0.0
        %353 = vmatprep.subr.mxu0 0.0
        %354 = vmatpush1.msra.mxu0 0.0
        %355 = vmatprep.subr.mxu0 0.0
        %356 = vmatpush1.msra.mxu0 0.0
        %357 = vmatprep.subr.mxu0 0.0
        %358 = vmatpush1.msra.mxu0 0.0
        %359 = vmatprep.subr.mxu0 0.0
        %360 = vmatpush1.msra.mxu0 0.0
        %361 = vmatprep.subr.mxu0 0.0
        %362 = vmatpush1.msra.mxu0 0.0
        %363 = vmatprep.subr.mxu0 0.0
        %364 = vmatpush1.msra.mxu0 0.0
        %365 = vmatprep.subr.mxu0 0.0
        %366 = vmatpush1.msra.mxu0 0.0
        %367 = vmatprep.mubr.f32.mxu0 0.0
        %368 = vmatmul.mubr.f32.gmra.mrb[0].mxu0 %v263
        %v369 = vpop.f32.mrb[0].mxu0
        %v370 = vadd.f32 0.0, %v369
        %v371 = vpop.f32.mrb[0].mxu0
        %v372 = vadd.f32 0.0, %v371
        %373 = vmatprep.mubr.f32.mxu0 0.0
        %374 = vmatmul.mubr.f32.gmra.mrb[0].mxu0 %v264
        %v375 = vpop.f32.mrb[0].mxu0
        %v376 = vadd.f32 0.0, %v375
        %v377 = vpop.f32.mrb[0].mxu0
        %v378 = vadd.f32 0.0, %v377
        %379 = vmatprep.mubr.f32.mxu0 0.0
        %380 = vmatmul.mubr.f32.gmra.mrb[0].mxu0 %v265
        %v381 = vpop.f32.mrb[0].mxu0
        %v382 = vadd.f32 0.0, %v381
        %v383 = vpop.f32.mrb[0].mxu0
        %v384 = vadd.f32 0.0, %v383
        %385 = vmatprep.mubr.f32.mxu0 0.0
        %386 = vmatmul.mubr.f32.gmra.mrb[0].mxu0 %v266
        %v387 = vpop.f32.mrb[0].mxu0
        %v388 = vadd.f32 0.0, %v387
        %v389 = vpop.f32.mrb[0].mxu0
        %v390 = vadd.f32 0.0, %v389
        %391 = vmatprep.mubr.f32.mxu0 0.0
        %392 = vmatmul.mubr.f32.gmra.mrb[0].mxu0 %v267
        %v393 = vpop.f32.mrb[0].mxu0
        %v394 = vadd.f32 0.0, %v393
        %v395 = vpop.f32.mrb[0].mxu0
        %v396 = vadd.f32 0.0, %v395
        %397 = vmatprep.mubr.f32.mxu0 0.0
        %398 = vmatmul.mubr.f32.gmra.mrb[0].mxu0 %v268
        %v399 = vpop.f32.mrb[0].mxu0
        %v400 = vadd.f32 0.0, %v399
        %v401 = vpop.f32.mrb[0].mxu0
        %v402 = vadd.f32 0.0, %v401
        %403 = vmatprep.mubr.f32.mxu0 0.0
        %404 = vmatmul.mubr.f32.gmra.mrb[0].mxu0 %v269
        %v405 = vpop.f32.mrb[0].mxu0
        %v406 = vadd.f32 0.0, %v405
        %v407 = vpop.f32.mrb[0].mxu0
        %v408 = vadd.f32 0.0, %v407
        %409 = vmatprep.mubr.f32.mxu0 0.0
        %410 = vmatmul.mubr.f32.gmra.mrb[0].mxu0 %v270
        %v411 = vpop.f32.mrb[0].mxu0
        %v412 = vadd.f32 0.0, %v411
        %v413 = vpop.f32.mrb[0].mxu0
        %v414 = vadd.f32 0.0, %v413
        %415 = vdwg.mxu0
        %v416 = vld [vmem:[%s2] sm:$0x1]
        %v417 = vld [vmem:[%s3] sm:$0x1]
        %vm418 = vcmask 523264
        %v419 = vsel %vm418, %v370, 0.0
        %420 = vadd.xlane.f32.xlu0 %v419
        %v421 = vpop.xlane.xlu0 %420
        %v422 = vsel %vm418, %v376, 0.0
        %423 = vadd.xlane.f32.xlu0 %v422
        %v424 = vpop.xlane.xlu0 %423
        %v425 = vsel %vm418, %v382, 0.0
        %426 = vadd.xlane.f32.xlu0 %v425
        %v427 = vpop.xlane.xlu0 %426
        %v428 = vsel %vm418, %v388, 0.0
        %429 = vadd.xlane.f32.xlu0 %v428
        %v430 = vpop.xlane.xlu0 %429
        %v431 = vsel %vm418, %v394, 0.0
        %432 = vadd.xlane.f32.xlu0 %v431
        %v433 = vpop.xlane.xlu0 %432
        %v434 = vsel %vm418, %v400, 0.0
        %435 = vadd.xlane.f32.xlu0 %v434
        %v436 = vpop.xlane.xlu0 %435
        %v437 = vsel %vm418, %v406, 0.0
        %438 = vadd.xlane.f32.xlu0 %v437
        %v439 = vpop.xlane.xlu0 %438
        %v440 = vsel %vm418, %v412, 0.0
        %441 = vadd.xlane.f32.xlu0 %v440
        %v442 = vpop.xlane.xlu0 %441
        %v443 = vrcp.pop 64.0
        %v444 = vmul.f32 %v421, %v443
        %v445 = vmul.f32 %v424, %v443
        %v446 = vmul.f32 %v427, %v443
        %v447 = vmul.f32 %v430, %v443
        %v448 = vmul.f32 %v433, %v443
        %v449 = vmul.f32 %v436, %v443
        %v450 = vmul.f32 %v439, %v443
        %v451 = vmul.f32 %v442, %v443
        %v452 = vsub.f32 %v370, %v444
        %v453 = vsub.f32 %v376, %v445
        %v454 = vsub.f32 %v382, %v446
        %v455 = vsub.f32 %v388, %v447
        %v456 = vsub.f32 %v394, %v448
        %v457 = vsub.f32 %v400, %v449
        %v458 = vsub.f32 %v406, %v450
        %v459 = vsub.f32 %v412, %v451
        %v460 = vmul.f32 %v452, %v452
        %v461 = vmul.f32 %v453, %v453
        %v462 = vmul.f32 %v454, %v454
        %v463 = vmul.f32 %v455, %v455
        %v464 = vmul.f32 %v456, %v456
        %v465 = vmul.f32 %v457, %v457
        %v466 = vmul.f32 %v458, %v458
        %v467 = vmul.f32 %v459, %v459
        %v468 = vsel %vm418, %v460, 0.0
        %469 = vadd.xlane.f32.xlu0 %v468
        %v470 = vpop.xlane.xlu0 %469
        %v471 = vsel %vm418, %v461, 0.0
        %472 = vadd.xlane.f32.xlu0 %v471
        %v473 = vpop.xlane.xlu0 %472
        %v474 = vsel %vm418, %v462, 0.0
        %475 = vadd.xlane.f32.xlu0 %v474
        %v476 = vpop.xlane.xlu0 %475
        %v477 = vsel %vm418, %v463, 0.0
        %478 = vadd.xlane.f32.xlu0 %v477
        %v479 = vpop.xlane.xlu0 %478
        %v480 = vsel %vm418, %v464, 0.0
        %481 = vadd.xlane.f32.xlu0 %v480
        %v482 = vpop.xlane.xlu0 %481
        %v483 = vsel %vm418, %v465, 0.0
        %484 = vadd.xlane.f32.xlu0 %v483
        %v485 = vpop.xlane.xlu0 %484
        %v486 = vsel %vm418, %v466, 0.0
        %487 = vadd.xlane.f32.xlu0 %v486
        %v488 = vpop.xlane.xlu0 %487
        %v489 = vsel %vm418, %v467, 0.0
        %490 = vadd.xlane.f32.xlu0 %v489
        %v491 = vpop.xlane.xlu0 %490
        %v492 = vmul.f32 %v470, %v443
        %v493 = vmul.f32 %v473, %v443
        %v494 = vmul.f32 %v476, %v443
        %v495 = vmul.f32 %v479, %v443
        %v496 = vmul.f32 %v482, %v443
        %v497 = vmul.f32 %v485, %v443
        %v498 = vmul.f32 %v488, %v443
        %v499 = vmul.f32 %v491, %v443
        %v500 = vadd.f32 %v492, 1e-05
        %v501 = vadd.f32 %v493, 1e-05
        %v502 = vadd.f32 %v494, 1e-05
        %v503 = vadd.f32 %v495, 1e-05
        %v504 = vadd.f32 %v496, 1e-05
        %v505 = vadd.f32 %v497, 1e-05
        %v506 = vadd.f32 %v498, 1e-05
        %v507 = vadd.f32 %v499, 1e-05
        %v508 = vrsqrt.pop %v500
        %v509 = vrsqrt.pop %v501
        %v510 = vrsqrt.pop %v502
        %v511 = vrsqrt.pop %v503
        %v512 = vrsqrt.pop %v504
        %v513 = vrsqrt.pop %v505
        %v514 = vrsqrt.pop %v506
        %v515 = vrsqrt.pop %v507
        %v516 = vmul.f32 %v452, %v508
        %v517 = vmul.f32 %v453, %v509
        %v518 = vmul.f32 %v454, %v510
        %v519 = vmul.f32 %v455, %v511
        %v520 = vmul.f32 %v456, %v512
        %v521 = vmul.f32 %v457, %v513
        %v522 = vmul.f32 %v458, %v514
        %v523 = vmul.f32 %v459, %v515
        %v525 = vlaneseq
        %v526 = vshrl.u32 %v525, 7
        %v527 = vsub.s32 0, %v526
        %v528 = vrot.slane %v416, %v527
        %v530 = vmul.f32 %v516, %v528
        %v531 = vmul.f32 %v517, %v528
        %v532 = vmul.f32 %v518, %v528
        %v533 = vmul.f32 %v519, %v528
        %v534 = vmul.f32 %v520, %v528
        %v535 = vmul.f32 %v521, %v528
        %v536 = vmul.f32 %v522, %v528
        %v537 = vmul.f32 %v523, %v528
        %v539 = vlaneseq
        %v540 = vshrl.u32 %v539, 7
        %v541 = vsub.s32 0, %v540
        %v542 = vrot.slane %v417, %v541
        %v544 = vadd.f32 %v530, %v542
        %v545 = vadd.f32 %v531, %v542
        %v546 = vadd.f32 %v532, %v542
        %v547 = vadd.f32 %v533, %v542
        %v548 = vadd.f32 %v534, %v542
        %v549 = vadd.f32 %v535, %v542
        %v550 = vadd.f32 %v536, %v542
        %v551 = vadd.f32 %v537, %v542
        %560 = vrot.lane.b32.xlu0 %v370, 64
        %v561 = vpop.permute.xlu0 %560
        %562 = vrot.lane.b32.xlu0 %v376, 64
        %v563 = vpop.permute.xlu0 %562
        %564 = vrot.lane.b32.xlu0 %v382, 64
        %v565 = vpop.permute.xlu0 %564
        %566 = vrot.lane.b32.xlu0 %v388, 64
        %v567 = vpop.permute.xlu0 %566
        %568 = vrot.lane.b32.xlu0 %v394, 64
        %v569 = vpop.permute.xlu0 %568
        %570 = vrot.lane.b32.xlu0 %v400, 64
        %v571 = vpop.permute.xlu0 %570
        %572 = vrot.lane.b32.xlu0 %v406, 64
        %v573 = vpop.permute.xlu0 %572
        %574 = vrot.lane.b32.xlu0 %v412, 64
        %v575 = vpop.permute.xlu0 %574
        %v584 = vsel %vm418, %v561, 0.0
        %585 = vadd.xlane.f32.xlu0 %v584
        %v586 = vpop.xlane.xlu0 %585
        %v587 = vsel %vm418, %v563, 0.0
        %588 = vadd.xlane.f32.xlu0 %v587
        %v589 = vpop.xlane.xlu0 %588
        %v590 = vsel %vm418, %v565, 0.0
        %591 = vadd.xlane.f32.xlu0 %v590
        %v592 = vpop.xlane.xlu0 %591
        %v593 = vsel %vm418, %v567, 0.0
        %594 = vadd.xlane.f32.xlu0 %v593
        %v595 = vpop.xlane.xlu0 %594
        %v596 = vsel %vm418, %v569, 0.0
        %597 = vadd.xlane.f32.xlu0 %v596
        %v598 = vpop.xlane.xlu0 %597
        %v599 = vsel %vm418, %v571, 0.0
        %600 = vadd.xlane.f32.xlu0 %v599
        %v601 = vpop.xlane.xlu0 %600
        %v602 = vsel %vm418, %v573, 0.0
        %603 = vadd.xlane.f32.xlu0 %v602
        %v604 = vpop.xlane.xlu0 %603
        %v605 = vsel %vm418, %v575, 0.0
        %606 = vadd.xlane.f32.xlu0 %v605
        %v607 = vpop.xlane.xlu0 %606
        %v608 = vmul.f32 %v586, %v443
        %v609 = vmul.f32 %v589, %v443
        %v610 = vmul.f32 %v592, %v443
        %v611 = vmul.f32 %v595, %v443
        %v612 = vmul.f32 %v598, %v443
        %v613 = vmul.f32 %v601, %v443
        %v614 = vmul.f32 %v604, %v443
        %v615 = vmul.f32 %v607, %v443
        %v616 = vsub.f32 %v370, %v608
        %v617 = vsub.f32 %v376, %v609
        %v618 = vsub.f32 %v382, %v610
        %v619 = vsub.f32 %v388, %v611
        %v620 = vsub.f32 %v394, %v612
        %v621 = vsub.f32 %v400, %v613
        %v622 = vsub.f32 %v406, %v614
        %v623 = vsub.f32 %v412, %v615
        %v624 = vmul.f32 %v616, %v616
        %v625 = vmul.f32 %v617, %v617
        %v626 = vmul.f32 %v618, %v618
        %v627 = vmul.f32 %v619, %v619
        %v628 = vmul.f32 %v620, %v620
        %v629 = vmul.f32 %v621, %v621
        %v630 = vmul.f32 %v622, %v622
        %v631 = vmul.f32 %v623, %v623
        %640 = vrot.lane.b32.xlu0 %v624, 64
        %v641 = vpop.permute.xlu0 %640
        %642 = vrot.lane.b32.xlu0 %v625, 64
        %v643 = vpop.permute.xlu0 %642
        %644 = vrot.lane.b32.xlu0 %v626, 64
        %v645 = vpop.permute.xlu0 %644
        %646 = vrot.lane.b32.xlu0 %v627, 64
        %v647 = vpop.permute.xlu0 %646
        %648 = vrot.lane.b32.xlu0 %v628, 64
        %v649 = vpop.permute.xlu0 %648
        %650 = vrot.lane.b32.xlu0 %v629, 64
        %v651 = vpop.permute.xlu0 %650
        %652 = vrot.lane.b32.xlu0 %v630, 64
        %v653 = vpop.permute.xlu0 %652
        %654 = vrot.lane.b32.xlu0 %v631, 64
        %v655 = vpop.permute.xlu0 %654
        %v664 = vsel %vm418, %v641, 0.0
        %665 = vadd.xlane.f32.xlu0 %v664
        %v666 = vpop.xlane.xlu0 %665
        %v667 = vsel %vm418, %v643, 0.0
        %668 = vadd.xlane.f32.xlu0 %v667
        %v669 = vpop.xlane.xlu0 %668
        %v670 = vsel %vm418, %v645, 0.0
        %671 = vadd.xlane.f32.xlu0 %v670
        %v672 = vpop.xlane.xlu0 %671
        %v673 = vsel %vm418, %v647, 0.0
        %674 = vadd.xlane.f32.xlu0 %v673
        %v675 = vpop.xlane.xlu0 %674
        %v676 = vsel %vm418, %v649, 0.0
        %677 = vadd.xlane.f32.xlu0 %v676
        %v678 = vpop.xlane.xlu0 %677
        %v679 = vsel %vm418, %v651, 0.0
        %680 = vadd.xlane.f32.xlu0 %v679
        %v681 = vpop.xlane.xlu0 %680
        %v682 = vsel %vm418, %v653, 0.0
        %683 = vadd.xlane.f32.xlu0 %v682
        %v684 = vpop.xlane.xlu0 %683
        %v685 = vsel %vm418, %v655, 0.0
        %686 = vadd.xlane.f32.xlu0 %v685
        %v687 = vpop.xlane.xlu0 %686
        %v688 = vmul.f32 %v666, %v443
        %v689 = vmul.f32 %v669, %v443
        %v690 = vmul.f32 %v672, %v443
        %v691 = vmul.f32 %v675, %v443
        %v692 = vmul.f32 %v678, %v443
        %v693 = vmul.f32 %v681, %v443
        %v694 = vmul.f32 %v684, %v443
        %v695 = vmul.f32 %v687, %v443
        %v696 = vadd.f32 %v688, 1e-05
        %v697 = vadd.f32 %v689, 1e-05
        %v698 = vadd.f32 %v690, 1e-05
        %v699 = vadd.f32 %v691, 1e-05
        %v700 = vadd.f32 %v692, 1e-05
        %v701 = vadd.f32 %v693, 1e-05
        %v702 = vadd.f32 %v694, 1e-05
        %v703 = vadd.f32 %v695, 1e-05
        %v704 = vrsqrt.pop %v696
        %v705 = vrsqrt.pop %v697
        %v706 = vrsqrt.pop %v698
        %v707 = vrsqrt.pop %v699
        %v708 = vrsqrt.pop %v700
        %v709 = vrsqrt.pop %v701
        %v710 = vrsqrt.pop %v702
        %v711 = vrsqrt.pop %v703
        %v712 = vmul.f32 %v616, %v704
        %v713 = vmul.f32 %v617, %v705
        %v714 = vmul.f32 %v618, %v706
        %v715 = vmul.f32 %v619, %v707
        %v716 = vmul.f32 %v620, %v708
        %v717 = vmul.f32 %v621, %v709
        %v718 = vmul.f32 %v622, %v710
        %v719 = vmul.f32 %v623, %v711
        %720 = vrot.lane.b32.xlu0 %v528, 64
        %v721 = vpop.permute.xlu0 %720
        %v723 = vmul.f32 %v712, %v721
        %v724 = vmul.f32 %v713, %v721
        %v725 = vmul.f32 %v714, %v721
        %v726 = vmul.f32 %v715, %v721
        %v727 = vmul.f32 %v716, %v721
        %v728 = vmul.f32 %v717, %v721
        %v729 = vmul.f32 %v718, %v721
        %v730 = vmul.f32 %v719, %v721
        %731 = vrot.lane.b32.xlu0 %v542, 64
        %v732 = vpop.permute.xlu0 %731
        %v734 = vadd.f32 %v723, %v732
        %v735 = vadd.f32 %v724, %v732
        %v736 = vadd.f32 %v725, %v732
        %v737 = vadd.f32 %v726, %v732
        %v738 = vadd.f32 %v727, %v732
        %v739 = vadd.f32 %v728, %v732
        %v740 = vadd.f32 %v729, %v732
        %v741 = vadd.f32 %v730, %v732
        %v742 = vsel %vm418, %v544, %v734
        %v743 = vsel %vm418, %v545, %v735
        %v744 = vsel %vm418, %v546, %v736
        %v745 = vsel %vm418, %v547, %v737
        %v746 = vsel %vm418, %v548, %v738
        %v747 = vsel %vm418, %v549, %v739
        %v748 = vsel %vm418, %v550, %v740
        %v749 = vsel %vm418, %v551, %v741
        %750 = vst [vmem:[%s261] sm:$0xff] %v742
        %751 = vst [vmem:[%s261 + $0x10] sm:$0xff] %v743
        %752 = vst [vmem:[%s261 + $0x20] sm:$0xff] %v744
        %753 = vst [vmem:[%s261 + $0x30] sm:$0xff] %v745
        %754 = vst [vmem:[%s261 + $0x40] sm:$0xff] %v746
        %755 = vst [vmem:[%s261 + $0x50] sm:$0xff] %v747
        %756 = vst [vmem:[%s261 + $0x60] sm:$0xff] %v748
        %757 = vst [vmem:[%s261 + $0x70] sm:$0xff] %v749
        %v758 = vsel %vm418, %v372, 0.0
        %759 = vadd.xlane.f32.xlu0 %v758
        %v760 = vpop.xlane.xlu0 %759
        %v761 = vsel %vm418, %v378, 0.0
        %762 = vadd.xlane.f32.xlu0 %v761
        %v763 = vpop.xlane.xlu0 %762
        %v764 = vsel %vm418, %v384, 0.0
        %765 = vadd.xlane.f32.xlu0 %v764
        %v766 = vpop.xlane.xlu0 %765
        %v767 = vsel %vm418, %v390, 0.0
        %768 = vadd.xlane.f32.xlu0 %v767
        %v769 = vpop.xlane.xlu0 %768
        %v770 = vsel %vm418, %v396, 0.0
        %771 = vadd.xlane.f32.xlu0 %v770
        %v772 = vpop.xlane.xlu0 %771
        %v773 = vsel %vm418, %v402, 0.0
        %774 = vadd.xlane.f32.xlu0 %v773
        %v775 = vpop.xlane.xlu0 %774
        %v776 = vsel %vm418, %v408, 0.0
        %777 = vadd.xlane.f32.xlu0 %v776
        %v778 = vpop.xlane.xlu0 %777
        %v779 = vsel %vm418, %v414, 0.0
        %780 = vadd.xlane.f32.xlu0 %v779
        %v781 = vpop.xlane.xlu0 %780
        %v782 = vmul.f32 %v760, %v443
        %v783 = vmul.f32 %v763, %v443
        %v784 = vmul.f32 %v766, %v443
        %v785 = vmul.f32 %v769, %v443
        %v786 = vmul.f32 %v772, %v443
        %v787 = vmul.f32 %v775, %v443
        %v788 = vmul.f32 %v778, %v443
        %v789 = vmul.f32 %v781, %v443
        %v790 = vsub.f32 %v372, %v782
        %v791 = vsub.f32 %v378, %v783
        %v792 = vsub.f32 %v384, %v784
        %v793 = vsub.f32 %v390, %v785
        %v794 = vsub.f32 %v396, %v786
        %v795 = vsub.f32 %v402, %v787
        %v796 = vsub.f32 %v408, %v788
        %v797 = vsub.f32 %v414, %v789
        %v798 = vmul.f32 %v790, %v790
        %v799 = vmul.f32 %v791, %v791
        %v800 = vmul.f32 %v792, %v792
        %v801 = vmul.f32 %v793, %v793
        %v802 = vmul.f32 %v794, %v794
        %v803 = vmul.f32 %v795, %v795
        %v804 = vmul.f32 %v796, %v796
        %v805 = vmul.f32 %v797, %v797
        %v806 = vsel %vm418, %v798, 0.0
        %807 = vadd.xlane.f32.xlu0 %v806
        %v808 = vpop.xlane.xlu0 %807
        %v809 = vsel %vm418, %v799, 0.0
        %810 = vadd.xlane.f32.xlu0 %v809
        %v811 = vpop.xlane.xlu0 %810
        %v812 = vsel %vm418, %v800, 0.0
        %813 = vadd.xlane.f32.xlu0 %v812
        %v814 = vpop.xlane.xlu0 %813
        %v815 = vsel %vm418, %v801, 0.0
        %816 = vadd.xlane.f32.xlu0 %v815
        %v817 = vpop.xlane.xlu0 %816
        %v818 = vsel %vm418, %v802, 0.0
        %819 = vadd.xlane.f32.xlu0 %v818
        %v820 = vpop.xlane.xlu0 %819
        %v821 = vsel %vm418, %v803, 0.0
        %822 = vadd.xlane.f32.xlu0 %v821
        %v823 = vpop.xlane.xlu0 %822
        %v824 = vsel %vm418, %v804, 0.0
        %825 = vadd.xlane.f32.xlu0 %v824
        %v826 = vpop.xlane.xlu0 %825
        %v827 = vsel %vm418, %v805, 0.0
        %828 = vadd.xlane.f32.xlu0 %v827
        %v829 = vpop.xlane.xlu0 %828
        %v830 = vmul.f32 %v808, %v443
        %v831 = vmul.f32 %v811, %v443
        %v832 = vmul.f32 %v814, %v443
        %v833 = vmul.f32 %v817, %v443
        %v834 = vmul.f32 %v820, %v443
        %v835 = vmul.f32 %v823, %v443
        %v836 = vmul.f32 %v826, %v443
        %v837 = vmul.f32 %v829, %v443
        %v838 = vadd.f32 %v830, 1e-05
        %v839 = vadd.f32 %v831, 1e-05
        %v840 = vadd.f32 %v832, 1e-05
        %v841 = vadd.f32 %v833, 1e-05
        %v842 = vadd.f32 %v834, 1e-05
        %v843 = vadd.f32 %v835, 1e-05
        %v844 = vadd.f32 %v836, 1e-05
        %v845 = vadd.f32 %v837, 1e-05
        %v846 = vrsqrt.pop %v838
        %v847 = vrsqrt.pop %v839
        %v848 = vrsqrt.pop %v840
        %v849 = vrsqrt.pop %v841
        %v850 = vrsqrt.pop %v842
        %v851 = vrsqrt.pop %v843
        %v852 = vrsqrt.pop %v844
        %v853 = vrsqrt.pop %v845
        %v854 = vmul.f32 %v790, %v846
        %v855 = vmul.f32 %v791, %v847
        %v856 = vmul.f32 %v792, %v848
        %v857 = vmul.f32 %v793, %v849
        %v858 = vmul.f32 %v794, %v850
        %v859 = vmul.f32 %v795, %v851
        %v860 = vmul.f32 %v796, %v852
        %v861 = vmul.f32 %v797, %v853
        %v862 = vmul.f32 %v854, %v528
        %v863 = vmul.f32 %v855, %v528
        %v864 = vmul.f32 %v856, %v528
        %v865 = vmul.f32 %v857, %v528
        %v866 = vmul.f32 %v858, %v528
        %v867 = vmul.f32 %v859, %v528
        %v868 = vmul.f32 %v860, %v528
        %v869 = vmul.f32 %v861, %v528
        %v870 = vadd.f32 %v862, %v542
        %v871 = vadd.f32 %v863, %v542
        %v872 = vadd.f32 %v864, %v542
        %v873 = vadd.f32 %v865, %v542
        %v874 = vadd.f32 %v866, %v542
        %v875 = vadd.f32 %v867, %v542
        %v876 = vadd.f32 %v868, %v542
        %v877 = vadd.f32 %v869, %v542
        %886 = vrot.lane.b32.xlu0 %v372, 64
        %v887 = vpop.permute.xlu0 %886
        %888 = vrot.lane.b32.xlu0 %v378, 64
        %v889 = vpop.permute.xlu0 %888
        %890 = vrot.lane.b32.xlu0 %v384, 64
        %v891 = vpop.permute.xlu0 %890
        %892 = vrot.lane.b32.xlu0 %v390, 64
        %v893 = vpop.permute.xlu0 %892
        %894 = vrot.lane.b32.xlu0 %v396, 64
        %v895 = vpop.permute.xlu0 %894
        %896 = vrot.lane.b32.xlu0 %v402, 64
        %v897 = vpop.permute.xlu0 %896
        %898 = vrot.lane.b32.xlu0 %v408, 64
        %v899 = vpop.permute.xlu0 %898
        %900 = vrot.lane.b32.xlu0 %v414, 64
        %v901 = vpop.permute.xlu0 %900
        %v910 = vsel %vm418, %v887, 0.0
        %911 = vadd.xlane.f32.xlu0 %v910
        %v912 = vpop.xlane.xlu0 %911
        %v913 = vsel %vm418, %v889, 0.0
        %914 = vadd.xlane.f32.xlu0 %v913
        %v915 = vpop.xlane.xlu0 %914
        %v916 = vsel %vm418, %v891, 0.0
        %917 = vadd.xlane.f32.xlu0 %v916
        %v918 = vpop.xlane.xlu0 %917
        %v919 = vsel %vm418, %v893, 0.0
        %920 = vadd.xlane.f32.xlu0 %v919
        %v921 = vpop.xlane.xlu0 %920
        %v922 = vsel %vm418, %v895, 0.0
        %923 = vadd.xlane.f32.xlu0 %v922
        %v924 = vpop.xlane.xlu0 %923
        %v925 = vsel %vm418, %v897, 0.0
        %926 = vadd.xlane.f32.xlu0 %v925
        %v927 = vpop.xlane.xlu0 %926
        %v928 = vsel %vm418, %v899, 0.0
        %929 = vadd.xlane.f32.xlu0 %v928
        %v930 = vpop.xlane.xlu0 %929
        %v931 = vsel %vm418, %v901, 0.0
        %932 = vadd.xlane.f32.xlu0 %v931
        %v933 = vpop.xlane.xlu0 %932
        %v934 = vmul.f32 %v912, %v443
        %v935 = vmul.f32 %v915, %v443
        %v936 = vmul.f32 %v918, %v443
        %v937 = vmul.f32 %v921, %v443
        %v938 = vmul.f32 %v924, %v443
        %v939 = vmul.f32 %v927, %v443
        %v940 = vmul.f32 %v930, %v443
        %v941 = vmul.f32 %v933, %v443
        %v942 = vsub.f32 %v372, %v934
        %v943 = vsub.f32 %v378, %v935
        %v944 = vsub.f32 %v384, %v936
        %v945 = vsub.f32 %v390, %v937
        %v946 = vsub.f32 %v396, %v938
        %v947 = vsub.f32 %v402, %v939
        %v948 = vsub.f32 %v408, %v940
        %v949 = vsub.f32 %v414, %v941
        %v950 = vmul.f32 %v942, %v942
        %v951 = vmul.f32 %v943, %v943
        %v952 = vmul.f32 %v944, %v944
        %v953 = vmul.f32 %v945, %v945
        %v954 = vmul.f32 %v946, %v946
        %v955 = vmul.f32 %v947, %v947
        %v956 = vmul.f32 %v948, %v948
        %v957 = vmul.f32 %v949, %v949
        %966 = vrot.lane.b32.xlu0 %v950, 64
        %v967 = vpop.permute.xlu0 %966
        %968 = vrot.lane.b32.xlu0 %v951, 64
        %v969 = vpop.permute.xlu0 %968
        %970 = vrot.lane.b32.xlu0 %v952, 64
        %v971 = vpop.permute.xlu0 %970
        %972 = vrot.lane.b32.xlu0 %v953, 64
        %v973 = vpop.permute.xlu0 %972
        %974 = vrot.lane.b32.xlu0 %v954, 64
        %v975 = vpop.permute.xlu0 %974
        %976 = vrot.lane.b32.xlu0 %v955, 64
        %v977 = vpop.permute.xlu0 %976
        %978 = vrot.lane.b32.xlu0 %v956, 64
        %v979 = vpop.permute.xlu0 %978
        %980 = vrot.lane.b32.xlu0 %v957, 64
        %v981 = vpop.permute.xlu0 %980
        %v990 = vsel %vm418, %v967, 0.0
        %991 = vadd.xlane.f32.xlu0 %v990
        %v992 = vpop.xlane.xlu0 %991
        %v993 = vsel %vm418, %v969, 0.0
        %994 = vadd.xlane.f32.xlu0 %v993
        %v995 = vpop.xlane.xlu0 %994
        %v996 = vsel %vm418, %v971, 0.0
        %997 = vadd.xlane.f32.xlu0 %v996
        %v998 = vpop.xlane.xlu0 %997
        %v999 = vsel %vm418, %v973, 0.0
        %1000 = vadd.xlane.f32.xlu0 %v999
        %v1001 = vpop.xlane.xlu0 %1000
        %v1002 = vsel %vm418, %v975, 0.0
        %1003 = vadd.xlane.f32.xlu0 %v1002
        %v1004 = vpop.xlane.xlu0 %1003
        %v1005 = vsel %vm418, %v977, 0.0
        %1006 = vadd.xlane.f32.xlu0 %v1005
        %v1007 = vpop.xlane.xlu0 %1006
        %v1008 = vsel %vm418, %v979, 0.0
        %1009 = vadd.xlane.f32.xlu0 %v1008
        %v1010 = vpop.xlane.xlu0 %1009
        %v1011 = vsel %vm418, %v981, 0.0
        %1012 = vadd.xlane.f32.xlu0 %v1011
        %v1013 = vpop.xlane.xlu0 %1012
        %v1014 = vmul.f32 %v992, %v443
        %v1015 = vmul.f32 %v995, %v443
        %v1016 = vmul.f32 %v998, %v443
        %v1017 = vmul.f32 %v1001, %v443
        %v1018 = vmul.f32 %v1004, %v443
        %v1019 = vmul.f32 %v1007, %v443
        %v1020 = vmul.f32 %v1010, %v443
        %v1021 = vmul.f32 %v1013, %v443
        %v1022 = vadd.f32 %v1014, 1e-05
        %v1023 = vadd.f32 %v1015, 1e-05
        %v1024 = vadd.f32 %v1016, 1e-05
        %v1025 = vadd.f32 %v1017, 1e-05
        %v1026 = vadd.f32 %v1018, 1e-05
        %v1027 = vadd.f32 %v1019, 1e-05
        %v1028 = vadd.f32 %v1020, 1e-05
        %v1029 = vadd.f32 %v1021, 1e-05
        %v1030 = vrsqrt.pop %v1022
        %v1031 = vrsqrt.pop %v1023
        %v1032 = vrsqrt.pop %v1024
        %v1033 = vrsqrt.pop %v1025
        %v1034 = vrsqrt.pop %v1026
        %v1035 = vrsqrt.pop %v1027
        %v1036 = vrsqrt.pop %v1028
        %v1037 = vrsqrt.pop %v1029
        %v1038 = vmul.f32 %v942, %v1030
        %v1039 = vmul.f32 %v943, %v1031
        %v1040 = vmul.f32 %v944, %v1032
        %v1041 = vmul.f32 %v945, %v1033
        %v1042 = vmul.f32 %v946, %v1034
        %v1043 = vmul.f32 %v947, %v1035
        %v1044 = vmul.f32 %v948, %v1036
        %v1045 = vmul.f32 %v949, %v1037
        %v1046 = vmul.f32 %v1038, %v721
        %v1047 = vmul.f32 %v1039, %v721
        %v1048 = vmul.f32 %v1040, %v721
        %v1049 = vmul.f32 %v1041, %v721
        %v1050 = vmul.f32 %v1042, %v721
        %v1051 = vmul.f32 %v1043, %v721
        %v1052 = vmul.f32 %v1044, %v721
        %v1053 = vmul.f32 %v1045, %v721
        %v1054 = vadd.f32 %v1046, %v732
        %v1055 = vadd.f32 %v1047, %v732
        %v1056 = vadd.f32 %v1048, %v732
        %v1057 = vadd.f32 %v1049, %v732
        %v1058 = vadd.f32 %v1050, %v732
        %v1059 = vadd.f32 %v1051, %v732
        %v1060 = vadd.f32 %v1052, %v732
        %v1061 = vadd.f32 %v1053, %v732
        %v1062 = vsel %vm418, %v870, %v1054
        %v1063 = vsel %vm418, %v871, %v1055
        %v1064 = vsel %vm418, %v872, %v1056
        %v1065 = vsel %vm418, %v873, %v1057
        %v1066 = vsel %vm418, %v874, %v1058
        %v1067 = vsel %vm418, %v875, %v1059
        %v1068 = vsel %vm418, %v876, %v1060
        %v1069 = vsel %vm418, %v877, %v1061
        %s1070 = scalar_lea.vmem %s261, 8
        %1071 = vst [vmem:[%s1070] sm:$0xff] %v1062
        %1072 = vst [vmem:[%s1070 + $0x10] sm:$0xff] %v1063
        %1073 = vst [vmem:[%s1070 + $0x20] sm:$0xff] %v1064
        %1074 = vst [vmem:[%s1070 + $0x30] sm:$0xff] %v1065
        %1075 = vst [vmem:[%s1070 + $0x40] sm:$0xff] %v1066
        %1076 = vst [vmem:[%s1070 + $0x50] sm:$0xff] %v1067
        %1077 = vst [vmem:[%s1070 + $0x60] sm:$0xff] %v1068
        %1078 = vst [vmem:[%s1070 + $0x70] sm:$0xff] %v1069
        %s1079 = smul.u32 8, %s24
        %p1080 = scmp.lt.s32.totalorder %s23, 1
        %s1081 = scalar_select %p1080, %s23, 1
        %p1082 = scmp.lt.s32.totalorder %s1079, 7
        %s1083 = scalar_select %p1082, %s1079, 7
        %s1084 = smul.addr %s1083, 2
        %s1085 = smul.addr %s1081, 16
        %s1086 = sadd.s32 %s1084, %s1085
        %s1087 = smul.addr %s1086, 8
        %s1088 = scalar_lea.vmem %s4, %s1087
        // Predicated region
        $region45: #{patch_expand.1} parent=35 // pred_check
          %p1089 = pneg %p142
        $region46: #{patch_expand.1} parent=35 // pred_check_branch
          %1091 = sbr.rel (%p1089) target = $region48
        $region47: #{patch_expand.1} parent=35 // pred_region
          %s1092 = smul.u32 8, %s24
        $region48: #{patch_expand.1} parent=35 // pred_fallthru
          _
      $region36: #{patch_expand.1} parent=5 // pred_fallthru
        _
      %p1093 = scmp.le.s32.totalorder 2, %s14
      // Predicated region
      $region49: #{patch_expand.1} parent=5 // pred_check
        %p1094 = pneg %p1093
      $region50: #{patch_expand.1} parent=5 // pred_check_branch
        %1096 = sbr.rel (%p1094) target = $region52
      $region51: #{patch_expand.1} parent=5 // pred_region
        %s1097 = ssub.s32 %s14, 2
        // Predicated region
        $region53: #{patch_expand.1} parent=51 // pred_check
          %p1098 = pneg %p148
        $region54: #{patch_expand.1} parent=51 // pred_check_branch
          %1100 = sbr.rel (%p1098) target = $region56
        $region55: #{patch_expand.1} parent=51 // pred_region
          %s1101 = smul.u32 8, %s26
          %p1102 = scmp.lt.s32.totalorder %s25, 1
          %s1103 = scalar_select %p1102, %s25, 1
          %p1104 = scmp.lt.s32.totalorder %s1101, 7
          %s1105 = scalar_select %p1104, %s1101, 7
          %s1106 = smul.addr %s1105, 2
          %s1107 = smul.addr %s1103, 16
          %s1108 = sadd.s32 %s1106, %s1107
          %s1109 = smul.addr %s1108, 8
          %s1110 = scalar_lea.vmem %s4, %s1109
        $region56: #{patch_expand.1} parent=51 // pred_fallthru
          _
      $region52: #{patch_expand.1} parent=5 // pred_fallthru
        _
    $region6: #{patch_expand.1} parent=1 // loop_footer
      %s18 = sadd.s32 1, %s14
    $region7: #{patch_expand.1} parent=1 // loop_footer_branch
      %13 = sbr.rel target = $region3
    $region8: #{patch_expand.1} parent=1 // loop_exit
      _
    %1111 = vsyncpa [#allocation3], 1
    %s1112 = scalar_lea.sflag [#allocation3], 1
    %1113 = vsyncpa %s1112, 1
    %1114 = vsyncpa [#allocation5], 1

</llo_original>
